<compile_context>
chip_gen: v7x
topology: tpu7x:2x2x1
jax: 0.10.0
libtpu: 0.0.40
codegen_flags: <defaults>
</compile_context>

<pallas_src>
import functools
from typing import NamedTuple

import jax
import jax.numpy as jnp
from jax.experimental import pallas as pl
from jax.experimental.pallas import tpu as pltpu


# ----------------------------- small helpers --------------------------------

def _round_up(x: int, m: int) -> int:
    return (x + m - 1) // m * m


def _hidden_dim(hidden_dim_arg: int, multiple_of: int) -> int:
    hd = int(2 * hidden_dim_arg / 3)
    return multiple_of * ((hd + multiple_of - 1) // multiple_of)


def _pad2(a, rows, cols):
    pr, pc = rows - a.shape[0], cols - a.shape[1]
    if pr or pc:
        a = jnp.pad(a, ((0, pr), (0, pc)))
    return a


def _vmem_capacity_bytes() -> int:
    try:
        return int(pltpu.get_tpu_info().vmem_capacity_bytes)
    except Exception:
        return 64 << 20  # conservative (v7x-sized) fallback


def _row_granule(compute_dtype) -> int:
    # Native sublane packing: f32 -> 8 rows, bf16 -> 16, 8-bit -> 32.
    return max(8, 32 // jnp.dtype(compute_dtype).itemsize)


def _pick_hidden_tile(hidden: int, th_cap: int):
    """Largest 128-multiple tile <= th_cap that minimises hidden padding."""
    h128 = _round_up(hidden, 128)
    th_cap = max(128, min(_round_up(th_cap, 128), h128))
    best_th, best_hp = 128, h128
    for cand in range(128, th_cap + 1, 128):
        hp = _round_up(hidden, cand)
        if hp < best_hp or (hp == best_hp and cand > best_th):
            best_th, best_hp = cand, hp
    return best_th, best_hp


def _pick_row_tile(M: int, tm_max: int, gran: int) -> int:
    Mg = _round_up(M, gran)
    if Mg <= tm_max:
        # Small M: aim for >=2 row tiles so both v7x TensorCores get work
        # (the "parallel" grid axis is what shards across cores).
        if Mg >= 2 * gran:
            return _round_up((Mg + 1) // 2, gran)
        return Mg
    # Large M: largest 128-multiple <= tm_max that minimises row padding.
    best_tm, best_mp = 128, _round_up(M, 128)
    for cand in range(128, tm_max + 1, 128):
        mp = _round_up(M, cand)
        if mp < best_mp or (mp == best_mp and cand > best_tm):
            best_tm, best_mp = cand, mp
    return best_tm


def _vmem_estimate(tm, th, dim_p, cb, ob):
    return (2 * tm * dim_p * cb            # x tiles (double-buffered)
            + 2 * dim_p * (2 * th) * cb    # fused gate_up tiles
            + 2 * th * dim_p * cb          # W2^T tiles
            + 2 * tm * dim_p * ob          # output tiles
            + tm * dim_p * 4               # f32 accumulator scratch
            + tm * (2 * th) * 4            # g = x @ gate_up   (f32)
            + tm * th * 4                  # gated             (f32)
            + tm * th * cb)                # gated cast back to compute dtype


# ----------------------------- planning / prep ------------------------------

class FFNPlan(NamedTuple):
    dim: int
    hidden: int
    dim_p: int
    hidden_p: int
    th: int
    tm_max: int
    compute_dtype: object
    vmem_limit: int


def plan_ffn(dim: int, hidden: int, *, compute_dtype=jnp.bfloat16,
             tm: int = 512, th: int = 512) -> FFNPlan:
    """One-time tiling / VMEM plan for a given FFN shape (call outside hot path)."""
    cb = jnp.dtype(compute_dtype).itemsize
    ob = 4  # worst case (f32) output dtype for the fit estimate
    dim_p = _round_up(dim, 128)

    cap = _vmem_capacity_bytes()
    usable = cap - max(8 << 20, cap // 8)     # ~56 MiB on v7x, ~112 MiB on v5e/v6e
    budget = int(usable * 0.9)

    tm_max = max(128, _round_up(tm, 128))
    th_eff, hidden_p = _pick_hidden_tile(hidden, th)

    # Auto-shrink tiles until the double-buffered working set fits the budget:
    # shrink the hidden tile first (keeps row reuse), then the row tile.
    while _vmem_estimate(tm_max, th_eff, dim_p, cb, ob) > budget:
        if th_eff > 128:
            th_eff, hidden_p = _pick_hidden_tile(hidden, th_eff - 128)
        elif tm_max > 128:
            tm_max -= 128
        else:
            # TODO(synk): also tile the dim (output-column) axis for widths where
            # even (tm=128, th=128) overflows VMEM; not reachable for LLaMA widths.
            break

    est = _vmem_estimate(tm_max, th_eff, dim_p, cb, ob)
    vmem_limit = int(min(cap - (2 << 20), max(32 << 20, int(est * 1.3))))

    return FFNPlan(dim=dim, hidden=hidden, dim_p=dim_p, hidden_p=hidden_p,
                   th=th_eff, tm_max=tm_max, compute_dtype=compute_dtype,
                   vmem_limit=vmem_limit)


def prepare_ffn_weights(w1, w2, w3, plan: FFNPlan):
    """One-time weight prep (pad + cast + transpose + gate/up fusion).

    w1, w3: [hidden, dim]  (PyTorch Linear (out, in) layout)
    w2:     [dim, hidden]

    Returns:
      gate_up_p: [dim_p, 2*hidden_p]  per-hidden-tile interleaved [W1^T | W3^T]
      w2t_p:     [hidden_p, dim_p]    W2^T
    Call once at parameter-prep time — NOT per forward pass.
    """
    dim, hidden = plan.dim, plan.hidden
    assert w1.shape == (hidden, dim) and w3.shape == (hidden, dim)
    assert w2.shape == (dim, hidden)
    cdt = plan.compute_dtype
    dim_p, hidden_p, th = plan.dim_p, plan.hidden_p, plan.th
    n_h = hidden_p // th

    w1t = _pad2(w1.T, dim_p, hidden_p).astype(cdt)
    w3t = _pad2(w3.T, dim_p, hidden_p).astype(cdt)
    # Interleave per hidden tile: columns [w1 tile h | w3 tile h] are contiguous,
    # so one (dim_p, 2*th) BlockSpec block feeds a single fused MXU pass.
    gate_up_p = jnp.concatenate(
        [w1t.reshape(dim_p, n_h, th), w3t.reshape(dim_p, n_h, th)], axis=2,
    ).reshape(dim_p, 2 * hidden_p)

    w2t_p = _pad2(w2.T, hidden_p, dim_p).astype(cdt)
    return gate_up_p, w2t_p


# --------------------------------- kernel -----------------------------------

def _ffn_kernel(x_ref, wgu_ref, w2t_ref, o_ref, acc_ref, *, th, nh):
    # x_ref:   (tm, dim_p)       row tile (constant across hidden axis)
    # wgu_ref: (dim_p, 2*th)     fused [W1^T | W3^T] hidden slice
    # w2t_ref: (th, dim_p)       W2^T hidden slice
    # o_ref:   (tm, dim_p)       output row tile
    # acc_ref: (tm, dim_p) f32   accumulator over hidden tiles (unused if nh==1)
    x = x_ref[...]
    # Fused up-projection: one MXU pass; f32 accumulation.
    g = jnp.dot(x, wgu_ref[...], preferred_element_type=jnp.float32)
    h1 = g[:, :th]
    h3 = g[:, th:]
    # SwiGLU gate in f32 (sigmoid on the EUP, muls on the VPU).
    gated = (h1 * jax.nn.sigmoid(h1)) * h3
    contrib = jnp.dot(gated.astype(w2t_ref.dtype), w2t_ref[...],
                      preferred_element_type=jnp.float32)

    if nh == 1:
        # Single hidden tile: no accumulator round-trip at all.
        o_ref[...] = contrib.astype(o_ref.dtype)
    else:
        h = pl.program_id(1)

        @pl.when(h == 0)
        def _():
            acc_ref[...] = contrib              # assign: no zero-init + RMW

        @pl.when(jnp.logical_and(h > 0, h < nh - 1))
        def _():
            acc_ref[...] += contrib

        @pl.when(h == nh - 1)
        def _():
            o_ref[...] = (acc_ref[...] + contrib).astype(o_ref.dtype)


# ------------------------------- hot-path call ------------------------------

def feed_forward(x, gate_up_p, w2t_p, plan: FFNPlan):
    """SwiGLU feed-forward. x: [batch, seq, dim]; weights pre-prepared via
    prepare_ffn_weights (padded, cast, transposed, gate/up fused)."""
    batch, seq, dim = x.shape
    assert dim == plan.dim
    dim_p, hidden_p, th = plan.dim_p, plan.hidden_p, plan.th
    assert gate_up_p.shape == (dim_p, 2 * hidden_p)
    assert w2t_p.shape == (hidden_p, dim_p)

    out_dtype = x.dtype
    M = batch * seq
    gran = _row_granule(plan.compute_dtype)
    tm_eff = _pick_row_tile(M, plan.tm_max, gran)
    M_p = _round_up(M, tm_eff)
    nh = hidden_p // th

    # Only the activation is padded/cast per call (weights were prepped once).
    xp = _pad2(x.reshape(M, dim), M_p, dim_p).astype(plan.compute_dtype)

    grid = (M_p // tm_eff, nh)
    kernel = functools.partial(_ffn_kernel, th=th, nh=nh)

    out2d = pl.pallas_call(
        kernel,
        out_shape=jax.ShapeDtypeStruct((M_p, dim_p), out_dtype),
        grid_spec=pltpu.PrefetchScalarGridSpec(
            num_scalar_prefetch=0,
            grid=grid,
            in_specs=[
                pl.BlockSpec((tm_eff, dim_p), lambda i, h: (i, 0)),
                pl.BlockSpec((dim_p, 2 * th), lambda i, h: (0, h)),
                pl.BlockSpec((th, dim_p), lambda i, h: (h, 0)),
            ],
            out_specs=pl.BlockSpec((tm_eff, dim_p), lambda i, h: (i, 0)),
            scratch_shapes=[pltpu.VMEM((tm_eff, dim_p), jnp.float32)],
        ),
        compiler_params=pltpu.CompilerParams(
            # Row axis parallel (v7x: shards row tiles across the 2 TCs);
            # hidden axis is a reduction -> arbitrary.
            dimension_semantics=("parallel", "arbitrary"),
            vmem_limit_bytes=plan.vmem_limit,
        ),
    )(xp, gate_up_p, w2t_p)

    return out2d[:M, :dim].reshape(batch, seq, dim)


# --------------------------------- reference --------------------------------

def _reference(x, w1, w2, w3):
    """Pure-JAX reference with weights in PyTorch Linear layout (out, in)."""
    h1 = jnp.einsum("bsd,hd->bsh", x, w1)
    h3 = jnp.einsum("bsd,hd->bsh", x, w3)
    g = (h1 * jax.nn.sigmoid(h1)) * h3
    return jnp.einsum("bsh,dh->bsd", g, w2)


if __name__ == "__main__":
    key = jax.random.PRNGKey(0)

    # --- test 1: small module-spec shapes, f32 compute, tight tolerance ---
    dim = 32
    hidden = _hidden_dim(128, 32)          # -> 96
    batch, seq = 2, 8

    kx, k1, k2, k3, key = jax.random.split(key, 5)
    x = jax.random.normal(kx, (batch, seq, dim), dtype=jnp.float32)
    # PyTorch Linear layout (out_features, in_features)
    w1 = jax.random.normal(k1, (hidden, dim), dtype=jnp.float32) * 0.05
    w2 = jax.random.normal(k2, (dim, hidden), dtype=jnp.float32) * 0.05
    w3 = jax.random.normal(k3, (hidden, dim), dtype=jnp.float32) * 0.05

    plan = plan_ffn(dim, hidden, compute_dtype=jnp.float32)
    gate_up_p, w2t_p = prepare_ffn_weights(w1, w2, w3, plan)   # one-time prep
    y = jax.block_until_ready(feed_forward(x, gate_up_p, w2t_p, plan))
    y_ref = _reference(x, w1, w2, w3)
    assert y.shape == (batch, seq, dim)
    assert jnp.allclose(y, y_ref, atol=1e-4, rtol=1e-4), "mismatch vs reference (f32)"

    # --- test 2: multi-tile grid, non-power-of-two hidden, default bf16 MXU ---
    dim2 = 256
    hidden2 = _hidden_dim(1024, 32)        # -> 704 (th=384, padded to 768)
    batch2, seq2 = 2, 384                  # M = 768 -> 2 row tiles of 384

    kx, k1, k2, k3, key = jax.random.split(key, 5)
    x2 = jax.random.normal(kx, (batch2, seq2, dim2), dtype=jnp.float32)
    w1b = jax.random.normal(k1, (hidden2, dim2), dtype=jnp.float32) * 0.03
    w2b = jax.random.normal(k2, (dim2, hidden2), dtype=jnp.float32) * 0.03
    w3b = jax.random.normal(k3, (hidden2, dim2), dtype=jnp.float32) * 0.03

    plan2 = plan_ffn(dim2, hidden2)        # default compute_dtype = bf16
    gate_up2, w2t2 = prepare_ffn_weights(w1b, w2b, w3b, plan2)
    y2 = jax.block_until_ready(feed_forward(x2, gate_up2, w2t2, plan2))
    y2_ref = _reference(x2, w1b, w2b, w3b)
    assert y2.shape == (batch2, seq2, dim2)
    # bf16 MXU inputs with f32 accumulation: loose tolerance vs all-f32 reference.
    assert jnp.allclose(y2, y2_ref, atol=5e-2, rtol=5e-2), "mismatch vs reference (bf16)"

    print("KERNEL_OK")
</pallas_src>

<mosaic_0001>
module attributes {stable_mosaic.version = 11 : i64} {
  func.func @_ffn_kernel(%arg0: i32, %arg1: i32, %arg2: memref<8x128xf32, #tpu.memory_space<vmem>>, %arg3: memref<128x256xf32, #tpu.memory_space<vmem>>, %arg4: memref<128x128xf32, #tpu.memory_space<vmem>>, %arg5: memref<8x128xf32, #tpu.memory_space<vmem>>, %arg6: memref<8x128xf32, #tpu.memory_space<vmem>>) attributes {dimension_semantics = [#tpu.dimension_semantics<parallel>, #tpu.dimension_semantics<arbitrary>], iteration_bounds = array<i64: 2, 1>, scalar_prefetch = 0 : i64, scratch_operands = 1 : i64, tpu.core_type = #tpu.core_type<tc>, window_params = [{transform_indices = @transform_0, window_bounds = array<i64: 8, 128>}, {transform_indices = @transform_1, window_bounds = array<i64: 128, 256>}, {transform_indices = @transform_2, window_bounds = array<i64: 128, 128>}, {transform_indices = @transform_3, window_bounds = array<i64: 8, 128>}]} {
    %c0 = arith.constant 0 : index
    %c0_0 = arith.constant 0 : index
    %0 = vector.load %arg2[%c0, %c0_0] : memref<8x128xf32, #tpu.memory_space<vmem>>, vector<8x128xf32>
    %c0_1 = arith.constant 0 : index
    %c0_2 = arith.constant 0 : index
    %1 = vector.load %arg3[%c0_1, %c0_2] : memref<128x256xf32, #tpu.memory_space<vmem>>, vector<128x256xf32>
    %cst = arith.constant dense<0.000000e+00> : vector<8x256xf32>
    %2 = tpu.matmul %0, %1, %cst {dimension_numbers = #tpu.dot_dimension_numbers<[1], [0], [0], [1], [0, 0, 1, 1], [], []>} : vector<8x128xf32>, vector<128x256xf32>, vector<8x256xf32> -> vector<8x256xf32>
    %3 = vector.extract_strided_slice %2 {offsets = [0, 0], sizes = [8, 128], strides = [1, 1]} : vector<8x256xf32> to vector<8x128xf32>
    %4 = vector.extract_strided_slice %2 {offsets = [0, 128], sizes = [8, 128], strides = [1, 1]} : vector<8x256xf32> to vector<8x128xf32>
    %5 = arith.negf %3 : vector<8x128xf32>
    %6 = math.exp %5 : vector<8x128xf32>
    %cst_3 = arith.constant 1.000000e+00 : f32
    %7 = vector.broadcast %cst_3 : f32 to vector<8x128xf32>
    %8 = arith.addf %7, %6 : vector<8x128xf32>
    %9 = arith.divf %7, %8 : vector<8x128xf32>
    %10 = arith.mulf %3, %9 : vector<8x128xf32>
    %11 = arith.mulf %10, %4 : vector<8x128xf32>
    %c0_4 = arith.constant 0 : index
    %c0_5 = arith.constant 0 : index
    %12 = vector.load %arg4[%c0_4, %c0_5] : memref<128x128xf32, #tpu.memory_space<vmem>>, vector<128x128xf32>
    %cst_6 = arith.constant dense<0.000000e+00> : vector<8x128xf32>
    %13 = tpu.matmul %11, %12, %cst_6 {dimension_numbers = #tpu.dot_dimension_numbers<[1], [0], [0], [1], [0, 0, 1, 1], [], []>} : vector<8x128xf32>, vector<128x128xf32>, vector<8x128xf32> -> vector<8x128xf32>
    %c0_7 = arith.constant 0 : index
    %c0_8 = arith.constant 0 : index
    %14 = vector.load %arg5[%c0_7, %c0_8] : memref<8x128xf32, #tpu.memory_space<vmem>>, vector<8x128xf32>
    tpu.vector_store %arg5[%c0_7, %c0_8], %13 {strides = array<i32>} : memref<8x128xf32, #tpu.memory_space<vmem>>, vector<8x128xf32>,
    return
  }
  func.func @transform_0(%arg0: i32, %arg1: i32) -> (i32, i32) {
    %c0_i32 = arith.constant 0 : i32
    %c0_i32_0 = arith.constant 0 : i32
    return %arg0, %c0_i32 : i32, i32
  }
  func.func @transform_1(%arg0: i32, %arg1: i32) -> (i32, i32) {
    %c0_i32 = arith.constant 0 : i32
    %c0_i32_0 = arith.constant 0 : i32
    return %c0_i32, %arg1 : i32, i32
  }
  func.func @transform_2(%arg0: i32, %arg1: i32) -> (i32, i32) {
    %c0_i32 = arith.constant 0 : i32
    %c0_i32_0 = arith.constant 0 : i32
    return %arg1, %c0_i32 : i32, i32
  }
  func.func @transform_3(%arg0: i32, %arg1: i32) -> (i32, i32) {
    %c0_i32 = arith.constant 0 : i32
    %c0_i32_0 = arith.constant 0 : i32
    return %arg0, %c0_i32 : i32, i32
  }
}

</mosaic_0001>

<llo_original>
// kernel: tpu_custom_call.1
$region0: #{tpu_custom_call.1}
  #allocation0 [shape = 'u32[]', space=smem, size = 0x4, offset = 0x4, fixed_abs, tag = 'smem constant byte address 0x4 - core index']
  #allocation1 [shape = 'u32[144,128]{1,0:T(1,128)}', space=vmem, size = 0x12000, scoped, tag = 'internal scratch']
  #allocation2 [shape = 'f32[8,128]{1,0:T(8,128)}', space=vmem, size = 0x1000, scoped, tag = 'scratch operand']
  %s0 = inlined_call_operand.hbm [shape: f32[16,128], index: 0, kind: input, shape index: {}]
  %s1 = inlined_call_operand.hbm [shape: f32[128,256], index: 1, kind: input, shape index: {}]
  %s2 = inlined_call_operand.hbm [shape: f32[128,128], index: 2, kind: input, shape index: {}]
  %s3 = inlined_call_operand.hbm [shape: f32[16,128], index: 3, kind: output, shape index: {}]
  %s4 = sld [smem:[#allocation0]]
  $region57: #{tpu_custom_call.1} parent=0
    _
  %s6 = ssub.s32 1, %s4
  %s7 = scalar_select 0, %s6, %s4
  $region1: #{tpu_custom_call.1} parent=0
    #allocation3 [shape = 'u8[8192]{0}', space=vmem, size = 0x2000, scoped, tag = 'input window, operand 0']
    #allocation4 [shape = 's32[2]{0}', space=sflag, size = 0x8, scoped, tag = 'scoped memory for tpu_custom_call.1']
    #allocation5 [shape = 's32[2]{0}', space=sflag, size = 0x8, scoped, tag = 'scoped memory for tpu_custom_call.1']
    #allocation6 [shape = 'u8[131072]{0}', space=vmem, size = 0x20000, scoped, tag = 'input window, operand 1, single buffered']
    #allocation7 [shape = 's32[1]{0}', space=sflag, size = 0x4, scoped, tag = 'scoped memory for tpu_custom_call.1']
    #allocation8 [shape = 'u8[65536]{0}', space=vmem, size = 0x10000, scoped, tag = 'input window, operand 2, single buffered']
    #allocation9 [shape = 'u8[8192]{0}', space=vmem, size = 0x2000, scoped, tag = 'output window, operand 0']
    %8 = vsyncpa [#allocation4], 0
    %s9 = scalar_lea.sflag [#allocation4], 1
    %10 = vsyncpa %s9, 0
    %11 = vsyncpa [#allocation7], 0
    %12 = vsyncpa [#allocation5], 0
    %s13 = scalar_lea.sflag [#allocation5], 1
    %14 = vsyncpa %s13, 0
    loop: start=0, step=1, limit=4
    $region2: #{tpu_custom_call.1} parent=1 // loop_pre_header
      _
    $region3: #{tpu_custom_call.1} parent=1 // loop_header
      %s16 = sphi 0, %s20
      %p17 = scmp.ge.s32.totalorder %s16, 4
      %s23 = sphi 0, %s35
      %s24 = sphi 0, %s31
      %s25 = sphi 0, %s23
      %s26 = sphi 0, %s24
      %s27 = sphi 0, %s25
      %s28 = sphi 0, %s26
      %s38 = sphi 0, %s40
      %s41 = sphi 0, %s38
      %s42 = sphi 0, %s41
      %s58 = sphi 0, %s42
      %s64 = sphi 0, %s66
      %s67 = sphi 0, %s64
      %s68 = sphi 0, %s67
      %s84 = sphi 0, %s68
      %s90 = sphi 0, %s92
      %s93 = sphi 0, %s90
      %s94 = sphi 0, %s93
      %s110 = sphi 0, %s94
      %s116 = sphi 0, %s118
      %s119 = sphi 0, %s116
      %s120 = sphi 0, %s119
      %s136 = sphi 0, %s120
    $region4: #{tpu_custom_call.1} parent=1 // loop_header_branch
      %19 = sbr.rel (%p17) target = $region8
    $region5: #{tpu_custom_call.1} parent=1 // loop_body
      %s21 = ssub.s32 %s16, 1
      %s22 = ssub.s32 %s16, 2
      %s29 = sadd.s32 1, %s24
      %p30 = scmp.ge.s32.totalorder %s29, 1
      %s31 = scalar_select %p30, 0, %s29
      %s32 = sadd.s32 1, %s23
      %s33 = scalar_select %p30, %s32, %s23
      %p34 = scmp.ge.s32.totalorder %s33, 2
      %s35 = scalar_select %p34, 0, %s33
      %s36 = ssub.s32 %s23, %s35
      %p37 = scmp.eq.s32.totalorder %s36, 0
      %s39 = sadd.s32 %s38, 1
      %s40 = scalar_select %p37, %s38, %s39
      %p43 = pneg %p37
      %p44 = scmp.eq.s32.totalorder %s16, 1
      %p45 = por %p43, %p44
      %p46 = scmp.ne.s32.totalorder %s38, %s41
      %p47 = scmp.eq.s32.totalorder %s16, 0
      %p48 = por %p46, %p47
      %p49 = scmp.ne.s32.totalorder %s38, %s41
      %p50 = scmp.eq.s32.totalorder %s21, 1
      %p51 = por %p49, %p50
      %p52 = scmp.ne.s32.totalorder %s41, %s42
      %p53 = scmp.eq.s32.totalorder %s21, 0
      %p54 = por %p52, %p53
      %p55 = scmp.ne.s32.totalorder %s41, %s42
      %p56 = scmp.eq.s32.totalorder %s22, 1
      %p57 = por %p55, %p56
      %p59 = scmp.ne.s32.totalorder %s42, %s58
      %p60 = scmp.eq.s32.totalorder %s22, 0
      %p61 = por %p59, %p60
      %s62 = ssub.s32 %s24, %s31
      %p63 = scmp.eq.s32.totalorder %s62, 0
      %s65 = sadd.s32 %s64, 1
      %s66 = scalar_select %p63, %s64, %s65
      %p69 = pneg %p63
      %p70 = scmp.eq.s32.totalorder %s16, 1
      %p71 = por %p69, %p70
      %p72 = scmp.ne.s32.totalorder %s64, %s67
      %p73 = scmp.eq.s32.totalorder %s16, 0
      %p74 = por %p72, %p73
      %p75 = scmp.ne.s32.totalorder %s64, %s67
      %p76 = scmp.eq.s32.totalorder %s21, 1
      %p77 = por %p75, %p76
      %p78 = scmp.ne.s32.totalorder %s67, %s68
      %p79 = scmp.eq.s32.totalorder %s21, 0
      %p80 = por %p78, %p79
      %p81 = scmp.ne.s32.totalorder %s67, %s68
      %p82 = scmp.eq.s32.totalorder %s22, 1
      %p83 = por %p81, %p82
      %p85 = scmp.ne.s32.totalorder %s68, %s84
      %p86 = scmp.eq.s32.totalorder %s22, 0
      %p87 = por %p85, %p86
      %s88 = ssub.s32 %s24, %s31
      %p89 = scmp.eq.s32.totalorder %s88, 0
      %s91 = sadd.s32 %s90, 1
      %s92 = scalar_select %p89, %s90, %s91
      %p95 = pneg %p89
      %p96 = scmp.eq.s32.totalorder %s16, 1
      %p97 = por %p95, %p96
      %p98 = scmp.ne.s32.totalorder %s90, %s93
      %p99 = scmp.eq.s32.totalorder %s16, 0
      %p100 = por %p98, %p99
      %p101 = scmp.ne.s32.totalorder %s90, %s93
      %p102 = scmp.eq.s32.totalorder %s21, 1
      %p103 = por %p101, %p102
      %p104 = scmp.ne.s32.totalorder %s93, %s94
      %p105 = scmp.eq.s32.totalorder %s21, 0
      %p106 = por %p104, %p105
      %p107 = scmp.ne.s32.totalorder %s93, %s94
      %p108 = scmp.eq.s32.totalorder %s22, 1
      %p109 = por %p107, %p108
      %p111 = scmp.ne.s32.totalorder %s94, %s110
      %p112 = scmp.eq.s32.totalorder %s22, 0
      %p113 = por %p111, %p112
      %s114 = ssub.s32 %s23, %s35
      %p115 = scmp.eq.s32.totalorder %s114, 0
      %s117 = sadd.s32 %s116, 1
      %s118 = scalar_select %p115, %s116, %s117
      %p121 = pneg %p115
      %p122 = scmp.eq.s32.totalorder %s16, 1
      %p123 = por %p121, %p122
      %p124 = scmp.ne.s32.totalorder %s116, %s119
      %p125 = scmp.eq.s32.totalorder %s16, 0
      %p126 = por %p124, %p125
      %p127 = scmp.ne.s32.totalorder %s116, %s119
      %p128 = scmp.eq.s32.totalorder %s21, 1
      %p129 = por %p127, %p128
      %p130 = scmp.ne.s32.totalorder %s119, %s120
      %p131 = scmp.eq.s32.totalorder %s21, 0
      %p132 = por %p130, %p131
      %p133 = scmp.ne.s32.totalorder %s119, %s120
      %p134 = scmp.eq.s32.totalorder %s22, 1
      %p135 = por %p133, %p134
      %p137 = scmp.ne.s32.totalorder %s120, %s136
      %p138 = scmp.eq.s32.totalorder %s22, 0
      %p139 = por %p137, %p138
      %p140 = scmp.le.s32.totalorder 1, %s16
      %p141 = scmp.lt.s32.totalorder %s16, 3
      %p142 = pnand %p140, %p141
      %p143 = pneg %p142
      // Predicated region
      $region9: #{tpu_custom_call.1} parent=5 // pred_check
        _
      $region10: #{tpu_custom_call.1} parent=5 // pred_check_branch
        %145 = sbr.rel (%p142) target = $region12
      $region11: #{tpu_custom_call.1} parent=5 // pred_region
        %s146 = ssub.s32 %s16, 1
        // Predicated region
        $region13: #{tpu_custom_call.1} parent=11 // pred_check
          %p147 = pneg %p80
        $region14: #{tpu_custom_call.1} parent=11 // pred_check_branch
          %149 = sbr.rel (%p147) target = $region16
        $region15: #{tpu_custom_call.1} parent=11 // pred_region
          %s150 = smul.u32 2, %s26
          %s152 = ssub.s32 4096, 4096
          %153 = vsyncadd [#allocation7], %s152
          %s154 = smul.addr %s150, 128
          %s155 = scalar_lea.hbm %s1, %s154
          %s156 = sshll.u32 [#allocation6], 4
          %s157 = int_to_ptr.vmem [resolvable:$true] %s156
          %162 = dma.hbm_to_vmem [thread:$0]  %s155, 4096, %s157, [#allocation7], 256, 256, 16
        $region16: #{tpu_custom_call.1} parent=11 // pred_fallthru
          _
        // Predicated region
        $region17: #{tpu_custom_call.1} parent=11 // pred_check
          %p163 = pneg %p106
        $region18: #{tpu_custom_call.1} parent=11 // pred_check_branch
          %165 = sbr.rel (%p163) target = $region20
        $region19: #{tpu_custom_call.1} parent=11 // pred_region
          %s166 = smul.u32 16, %s26
          %s168 = ssub.s32 2048, 2048
          %169 = vsyncadd [#allocation7], %s168
          %s170 = smul.addr %s166, 128
          %s171 = scalar_lea.hbm %s2, %s170
          %s172 = sshll.u32 [#allocation8], 4
          %s173 = int_to_ptr.vmem [resolvable:$true] %s172
          %178 = dma.hbm_to_vmem [thread:$0]  %s171, 2048, %s173, [#allocation7], 128, 128, 8
        $region20: #{tpu_custom_call.1} parent=11 // pred_fallthru
          _
      $region12: #{tpu_custom_call.1} parent=5 // pred_fallthru
        _
      %p179 = scmp.lt.s32.totalorder %s16, 2
      // Predicated region
      $region21: #{tpu_custom_call.1} parent=5 // pred_check
        %p180 = pneg %p179
      $region22: #{tpu_custom_call.1} parent=5 // pred_check_branch
        %182 = sbr.rel (%p180) target = $region24
      $region23: #{tpu_custom_call.1} parent=5 // pred_region
        // Predicated region
        $region25: #{tpu_custom_call.1} parent=23 // pred_check
          %p183 = pneg %p48
        $region26: #{tpu_custom_call.1} parent=23 // pred_check_branch
          %185 = sbr.rel (%p183) target = $region28
        $region27: #{tpu_custom_call.1} parent=23 // pred_region
          %s186 = sand.u32 %s38, 1
          %s187 = scalar_lea.sflag [#allocation4], %s186
          %s188 = sand.u32 %s38, 1
          %s189 = smul.addr %s188, 8
          %s190 = scalar_lea.vmem [#allocation3], %s189
          %s192 = ssub.s32 128, 128
          %193 = vsyncadd %s187, %s192
          %s194 = smul.addr %s23, 128
          %s195 = scalar_lea.hbm %s0, %s194
          %s197 = sshll.u32 %s190, 4
          %s198 = int_to_ptr.vmem [resolvable:$true] %s197
          %200 = dma.hbm_to_vmem [thread:$0]  %s195, 128, %s198, %s187
        $region28: #{tpu_custom_call.1} parent=23 // pred_fallthru
          _
      $region24: #{tpu_custom_call.1} parent=5 // pred_fallthru
        _
      %p201 = scmp.le.s32.totalorder 1, %s16
      %p202 = scmp.lt.s32.totalorder %s16, 3
      %p203 = pnand %p201, %p202
      %p204 = pneg %p203
      // Predicated region
      $region29: #{tpu_custom_call.1} parent=5 // pred_check
        _
      $region30: #{tpu_custom_call.1} parent=5 // pred_check_branch
        %206 = sbr.rel (%p203) target = $region32
      $region31: #{tpu_custom_call.1} parent=5 // pred_region
        %s207 = ssub.s32 %s16, 1
        %s208 = sand.u32 %s41, 1
        %s209 = scalar_lea.sflag [#allocation4], %s208
        %s210 = sand.u32 %s41, 1
        %s211 = smul.addr %s210, 8
        %s212 = scalar_lea.vmem [#allocation3], %s211
        // Predicated region
        $region33: #{tpu_custom_call.1} parent=31 // pred_check
          %p213 = pneg %p54
        $region34: #{tpu_custom_call.1} parent=31 // pred_check_branch
          %215 = sbr.rel (%p213) target = $region36
        $region35: #{tpu_custom_call.1} parent=31 // pred_region
          %216 = dma.done %s209, 128
        $region36: #{tpu_custom_call.1} parent=31 // pred_fallthru
          _
        // Predicated region
        $region37: #{tpu_custom_call.1} parent=31 // pred_check
          %p217 = pneg %p80
        $region38: #{tpu_custom_call.1} parent=31 // pred_check_branch
          %219 = sbr.rel (%p217) target = $region40
        $region39: #{tpu_custom_call.1} parent=31 // pred_region
          %220 = dma.done [#allocation7], 4096
        $region40: #{tpu_custom_call.1} parent=31 // pred_fallthru
          _
        // Predicated region
        $region41: #{tpu_custom_call.1} parent=31 // pred_check
          %p221 = pneg %p106
        $region42: #{tpu_custom_call.1} parent=31 // pred_check_branch
          %223 = sbr.rel (%p221) target = $region44
        $region43: #{tpu_custom_call.1} parent=31 // pred_region
          %224 = dma.done [#allocation7], 2048
        $region44: #{tpu_custom_call.1} parent=31 // pred_fallthru
          _
        %s225 = sand.u32 %s41, 1
        %s226 = scalar_lea.sflag [#allocation4], %s225
        %s227 = sand.u32 %s41, 1
        %s228 = smul.addr %s227, 8
        %s229 = scalar_lea.vmem [#allocation3], %s228
        %p230 = pneg %p54
        %p231 = pneg %p51
        %p232 = pneg %p80
        %p233 = pneg %p77
        %p234 = pneg %p106
        %p235 = pneg %p103
        %p236 = pneg %p132
        %p237 = pneg %p129
        %s238 = sand.u32 %s119, 1
        %s239 = scalar_lea.sflag [#allocation5], %s238
        %s240 = sand.u32 %s119, 1
        %s241 = smul.addr %s240, 8
        %s242 = scalar_lea.vmem [#allocation9], %s241
        %s243 = smul.u32 2, %s26
        %s244 = smul.u32 16, %s26
        %v245 = vld [vmem:[%s212] sm:$0xff]
        %v246 = vld [vmem:[#allocation6] sm:$0xff]
        %v247 = vld [vmem:[#allocation6 + $0x8] sm:$0xff]
        %v248 = vld [vmem:[#allocation6 + $0x10] sm:$0xff]
        %v249 = vld [vmem:[#allocation6 + $0x18] sm:$0xff]
        %v250 = vld [vmem:[#allocation6 + $0x20] sm:$0xff]
        %v251 = vld [vmem:[#allocation6 + $0x28] sm:$0xff]
        %v252 = vld [vmem:[#allocation6 + $0x30] sm:$0xff]
        %v253 = vld [vmem:[#allocation6 + $0x38] sm:$0xff]
        %v254 = vld [vmem:[#allocation6 + $0x40] sm:$0xff]
        %v255 = vld [vmem:[#allocation6 + $0x48] sm:$0xff]
        %v256 = vld [vmem:[#allocation6 + $0x50] sm:$0xff]
        %v257 = vld [vmem:[#allocation6 + $0x58] sm:$0xff]
        %v258 = vld [vmem:[#allocation6 + $0x60] sm:$0xff]
        %v259 = vld [vmem:[#allocation6 + $0x68] sm:$0xff]
        %v260 = vld [vmem:[#allocation6 + $0x70] sm:$0xff]
        %v261 = vld [vmem:[#allocation6 + $0x78] sm:$0xff]
        %v262 = vld [vmem:[#allocation6 + $0x80] sm:$0xff]
        %v263 = vld [vmem:[#allocation6 + $0x88] sm:$0xff]
        %v264 = vld [vmem:[#allocation6 + $0x90] sm:$0xff]
        %v265 = vld [vmem:[#allocation6 + $0x98] sm:$0xff]
        %v266 = vld [vmem:[#allocation6 + $0xa0] sm:$0xff]
        %v267 = vld [vmem:[#allocation6 + $0xa8] sm:$0xff]
        %v268 = vld [vmem:[#allocation6 + $0xb0] sm:$0xff]
        %v269 = vld [vmem:[#allocation6 + $0xb8] sm:$0xff]
        %v270 = vld [vmem:[#allocation6 + $0xc0] sm:$0xff]
        %v271 = vld [vmem:[#allocation6 + $0xc8] sm:$0xff]
        %v272 = vld [vmem:[#allocation6 + $0xd0] sm:$0xff]
        %v273 = vld [vmem:[#allocation6 + $0xd8] sm:$0xff]
        %v274 = vld [vmem:[#allocation6 + $0xe0] sm:$0xff]
        %v275 = vld [vmem:[#allocation6 + $0xe8] sm:$0xff]
        %v276 = vld [vmem:[#allocation6 + $0xf0] sm:$0xff]
        %v277 = vld [vmem:[#allocation6 + $0xf8] sm:$0xff]
        %278 = vmatprep.subr.mxu0 %v247
        %279 = vmatpush1.msra.mxu0 %v246
        %280 = vmatprep.subr.mxu0 %v249
        %281 = vmatpush1.msra.mxu0 %v248
        %282 = vmatprep.subr.mxu0 %v251
        %283 = vmatpush1.msra.mxu0 %v250
        %284 = vmatprep.subr.mxu0 %v253
        %285 = vmatpush1.msra.mxu0 %v252
        %286 = vmatprep.subr.mxu0 %v255
        %287 = vmatpush1.msra.mxu0 %v254
        %288 = vmatprep.subr.mxu0 %v257
        %289 = vmatpush1.msra.mxu0 %v256
        %290 = vmatprep.subr.mxu0 %v259
        %291 = vmatpush1.msra.mxu0 %v258
        %292 = vmatprep.subr.mxu0 %v261
        %293 = vmatpush1.msra.mxu0 %v260
        %294 = vmatprep.subr.mxu0 %v263
        %295 = vmatpush1.msra.mxu0 %v262
        %296 = vmatprep.subr.mxu0 %v265
        %297 = vmatpush1.msra.mxu0 %v264
        %298 = vmatprep.subr.mxu0 %v267
        %299 = vmatpush1.msra.mxu0 %v266
        %300 = vmatprep.subr.mxu0 %v269
        %301 = vmatpush1.msra.mxu0 %v268
        %302 = vmatprep.subr.mxu0 %v271
        %303 = vmatpush1.msra.mxu0 %v270
        %304 = vmatprep.subr.mxu0 %v273
        %305 = vmatpush1.msra.mxu0 %v272
        %306 = vmatprep.subr.mxu0 %v275
        %307 = vmatpush1.msra.mxu0 %v274
        %308 = vmatprep.subr.mxu0 %v277
        %309 = vmatpush1.msra.mxu0 %v276
        %310 = vmatprep.subr.mxu0 0.0
        %311 = vmatpush1.msra.mxu0 0.0
        %312 = vmatprep.subr.mxu0 0.0
        %313 = vmatpush1.msra.mxu0 0.0
        %314 = vmatprep.subr.mxu0 0.0
        %315 = vmatpush1.msra.mxu0 0.0
        %316 = vmatprep.subr.mxu0 0.0
        %317 = vmatpush1.msra.mxu0 0.0
        %318 = vmatprep.subr.mxu0 0.0
        %319 = vmatpush1.msra.mxu0 0.0
        %320 = vmatprep.subr.mxu0 0.0
        %321 = vmatpush1.msra.mxu0 0.0
        %322 = vmatprep.subr.mxu0 0.0
        %323 = vmatpush1.msra.mxu0 0.0
        %324 = vmatprep.subr.mxu0 0.0
        %325 = vmatpush1.msra.mxu0 0.0
        %326 = vmatprep.subr.mxu0 0.0
        %327 = vmatpush1.msra.mxu0 0.0
        %328 = vmatprep.subr.mxu0 0.0
        %329 = vmatpush1.msra.mxu0 0.0
        %330 = vmatprep.subr.mxu0 0.0
        %331 = vmatpush1.msra.mxu0 0.0
        %332 = vmatprep.subr.mxu0 0.0
        %333 = vmatpush1.msra.mxu0 0.0
        %334 = vmatprep.subr.mxu0 0.0
        %335 = vmatpush1.msra.mxu0 0.0
        %336 = vmatprep.subr.mxu0 0.0
        %337 = vmatpush1.msra.mxu0 0.0
        %338 = vmatprep.subr.mxu0 0.0
        %339 = vmatpush1.msra.mxu0 0.0
        %340 = vmatprep.subr.mxu0 0.0
        %341 = vmatpush1.msra.mxu0 0.0
        %342 = vmatprep.mubr.f32.mxu0 0.0
        %343 = vmatmul.mubr.f32.gmra.mrb[0].mxu0 %v245
        %v344 = vpop.f32.mrb[0].mxu0
        %v345 = vadd.f32 0.0, %v344
        %v346 = vpop.f32.mrb[0].mxu0
        %v347 = vadd.f32 0.0, %v346
        %348 = vdwg.mxu0
        %v349 = vxor.u32 %v345, 2147483648
        %v350 = vmul.f32 %v349, 1.442695
        %v351 = vpow.pop %v350
        %v352 = vadd.f32 %v351, 1.0
        %v353 = vrcp.pop %v352
        %v354 = vmul.f32 1.0, %v353
        %v355 = vmul.f32 %v345, %v354
        %v356 = vmul.f32 %v355, %v347
        %v357 = vld [vmem:[#allocation8] sm:$0xff]
        %v358 = vld [vmem:[#allocation8 + $0x8] sm:$0xff]
        %v359 = vld [vmem:[#allocation8 + $0x10] sm:$0xff]
        %v360 = vld [vmem:[#allocation8 + $0x18] sm:$0xff]
        %v361 = vld [vmem:[#allocation8 + $0x20] sm:$0xff]
        %v362 = vld [vmem:[#allocation8 + $0x28] sm:$0xff]
        %v363 = vld [vmem:[#allocation8 + $0x30] sm:$0xff]
        %v364 = vld [vmem:[#allocation8 + $0x38] sm:$0xff]
        %v365 = vld [vmem:[#allocation8 + $0x40] sm:$0xff]
        %v366 = vld [vmem:[#allocation8 + $0x48] sm:$0xff]
        %v367 = vld [vmem:[#allocation8 + $0x50] sm:$0xff]
        %v368 = vld [vmem:[#allocation8 + $0x58] sm:$0xff]
        %v369 = vld [vmem:[#allocation8 + $0x60] sm:$0xff]
        %v370 = vld [vmem:[#allocation8 + $0x68] sm:$0xff]
        %v371 = vld [vmem:[#allocation8 + $0x70] sm:$0xff]
        %v372 = vld [vmem:[#allocation8 + $0x78] sm:$0xff]
        %373 = vmatprep.subr.mxu0 0.0
        %374 = vmatpush1.msra.mxu0 %v357
        %375 = vmatprep.subr.mxu0 0.0
        %376 = vmatpush1.msra.mxu0 %v358
        %377 = vmatprep.subr.mxu0 0.0
        %378 = vmatpush1.msra.mxu0 %v359
        %379 = vmatprep.subr.mxu0 0.0
        %380 = vmatpush1.msra.mxu0 %v360
        %381 = vmatprep.subr.mxu0 0.0
        %382 = vmatpush1.msra.mxu0 %v361
        %383 = vmatprep.subr.mxu0 0.0
        %384 = vmatpush1.msra.mxu0 %v362
        %385 = vmatprep.subr.mxu0 0.0
        %386 = vmatpush1.msra.mxu0 %v363
        %387 = vmatprep.subr.mxu0 0.0
        %388 = vmatpush1.msra.mxu0 %v364
        %389 = vmatprep.subr.mxu0 0.0
        %390 = vmatpush1.msra.mxu0 %v365
        %391 = vmatprep.subr.mxu0 0.0
        %392 = vmatpush1.msra.mxu0 %v366
        %393 = vmatprep.subr.mxu0 0.0
        %394 = vmatpush1.msra.mxu0 %v367
        %395 = vmatprep.subr.mxu0 0.0
        %396 = vmatpush1.msra.mxu0 %v368
        %397 = vmatprep.subr.mxu0 0.0
        %398 = vmatpush1.msra.mxu0 %v369
        %399 = vmatprep.subr.mxu0 0.0
        %400 = vmatpush1.msra.mxu0 %v370
        %401 = vmatprep.subr.mxu0 0.0
        %402 = vmatpush1.msra.mxu0 %v371
        %403 = vmatprep.subr.mxu0 0.0
        %404 = vmatpush1.msra.mxu0 %v372
        %405 = vmatprep.subr.mxu0 0.0
        %406 = vmatpush1.msra.mxu0 0.0
        %407 = vmatprep.subr.mxu0 0.0
        %408 = vmatpush1.msra.mxu0 0.0
        %409 = vmatprep.subr.mxu0 0.0
        %410 = vmatpush1.msra.mxu0 0.0
        %411 = vmatprep.subr.mxu0 0.0
        %412 = vmatpush1.msra.mxu0 0.0
        %413 = vmatprep.subr.mxu0 0.0
        %414 = vmatpush1.msra.mxu0 0.0
        %415 = vmatprep.subr.mxu0 0.0
        %416 = vmatpush1.msra.mxu0 0.0
        %417 = vmatprep.subr.mxu0 0.0
        %418 = vmatpush1.msra.mxu0 0.0
        %419 = vmatprep.subr.mxu0 0.0
        %420 = vmatpush1.msra.mxu0 0.0
        %421 = vmatprep.subr.mxu0 0.0
        %422 = vmatpush1.msra.mxu0 0.0
        %423 = vmatprep.subr.mxu0 0.0
        %424 = vmatpush1.msra.mxu0 0.0
        %425 = vmatprep.subr.mxu0 0.0
        %426 = vmatpush1.msra.mxu0 0.0
        %427 = vmatprep.subr.mxu0 0.0
        %428 = vmatpush1.msra.mxu0 0.0
        %429 = vmatprep.subr.mxu0 0.0
        %430 = vmatpush1.msra.mxu0 0.0
        %431 = vmatprep.subr.mxu0 0.0
        %432 = vmatpush1.msra.mxu0 0.0
        %433 = vmatprep.subr.mxu0 0.0
        %434 = vmatpush1.msra.mxu0 0.0
        %435 = vmatprep.subr.mxu0 0.0
        %436 = vmatpush1.msra.mxu0 0.0
        %437 = vmatprep.mubr.f32.mxu0 0.0
        %438 = vmatmul.mubr.f32.gmra.mrb[0].mxu0 %v356
        %v439 = vpop.f32.mrb[0].mxu0
        %v440 = vadd.f32 0.0, %v439
        %v441 = vpop.f32.mrb[0].mxu0
        %442 = vdwg.mxu0
        %443 = vst [vmem:[%s242] sm:$0xff] %v440
        %s444 = sand.u32 %s119, 1
        %s445 = scalar_lea.sflag [#allocation5], %s444
        %s446 = sand.u32 %s119, 1
        %s447 = smul.addr %s446, 8
        %s448 = scalar_lea.vmem [#allocation9], %s447
        // Predicated region
        $region45: #{tpu_custom_call.1} parent=31 // pred_check
          %p449 = pneg %p129
        $region46: #{tpu_custom_call.1} parent=31 // pred_check_branch
          %451 = sbr.rel (%p449) target = $region48
        $region47: #{tpu_custom_call.1} parent=31 // pred_region
          %s453 = ssub.s32 128, 128
          %454 = vsyncadd %s445, %s453
          %s455 = smul.addr %s25, 128
          %s456 = scalar_lea.hbm %s3, %s455
          %s458 = sshll.u32 %s448, 4
          %s459 = int_to_ptr.vmem [resolvable:$true] %s458
          %461 = dma.vmem_to_hbm [thread:$0]  %s459, 128, %s456, %s445
        $region48: #{tpu_custom_call.1} parent=31 // pred_fallthru
          _
      $region32: #{tpu_custom_call.1} parent=5 // pred_fallthru
        _
      %p462 = scmp.le.s32.totalorder 2, %s16
      // Predicated region
      $region49: #{tpu_custom_call.1} parent=5 // pred_check
        %p463 = pneg %p462
      $region50: #{tpu_custom_call.1} parent=5 // pred_check_branch
        %465 = sbr.rel (%p463) target = $region52
      $region51: #{tpu_custom_call.1} parent=5 // pred_region
        %s466 = ssub.s32 %s16, 2
        // Predicated region
        $region53: #{tpu_custom_call.1} parent=51 // pred_check
          %p467 = pneg %p135
        $region54: #{tpu_custom_call.1} parent=51 // pred_check_branch
          %469 = sbr.rel (%p467) target = $region56
        $region55: #{tpu_custom_call.1} parent=51 // pred_region
          %s470 = sand.u32 %s120, 1
          %s471 = scalar_lea.sflag [#allocation5], %s470
          %s472 = sand.u32 %s120, 1
          %s473 = smul.addr %s472, 8
          %s474 = scalar_lea.vmem [#allocation9], %s473
          %475 = dma.done %s471, 128
        $region56: #{tpu_custom_call.1} parent=51 // pred_fallthru
          _
      $region52: #{tpu_custom_call.1} parent=5 // pred_fallthru
        _
    $region6: #{tpu_custom_call.1} parent=1 // loop_footer
      %s20 = sadd.s32 1, %s16
    $region7: #{tpu_custom_call.1} parent=1 // loop_footer_branch
      %15 = sbr.rel target = $region3
    $region8: #{tpu_custom_call.1} parent=1 // loop_exit
      _
    %476 = vsyncpa [#allocation4], 1
    %s477 = scalar_lea.sflag [#allocation4], 1
    %478 = vsyncpa %s477, 1
    %479 = vsyncpa [#allocation7], 1
    %480 = vsyncpa [#allocation5], 1
    %s481 = scalar_lea.sflag [#allocation5], 1
    %482 = vsyncpa %s481, 1

</llo_original>
